<compile_context>
chip_gen: v7x
topology: tpu7x:2x2x1
jax: 0.10.0
libtpu: 0.0.40
codegen_flags: <defaults>
</compile_context>

<pallas_src>
import jax
import jax.numpy as jnp
from jax.experimental import pallas as pl
from jax.experimental.pallas import tpu as pltpu


def _round_up(v, m):
    return (v + m - 1) // m * m


def _largest_aligned_divisor(total, align, cap):
    """Largest d <= cap with d % align == 0 and total % d == 0 (total % align == 0)."""
    best = align
    for d in range(align, min(total, cap) + 1, align):
        if total % d == 0:
            best = d
    return best


# ---------------------------------------------------------------------------
# Kernels
# ---------------------------------------------------------------------------
def _graph_fused_kernel(adj_ref, x_ref, o_ref):
    """Whole op in one invocation: adj [N,N] f32, x [B,N,F] f32 -> o [B,N,F] f32.

    B is tiny and static, so the batch loop is unrolled into B 2-D MXU matmuls;
    no padding, no accumulator scratch, no wrapper-side repacking needed.
    """
    adj = adj_ref[...]
    for b in range(x_ref.shape[0]):
        o_ref[b, :, :] = jnp.dot(
            adj, x_ref[b, :, :], preferred_element_type=jnp.float32
        ).astype(o_ref.dtype)


def _graph_tiled_kernel_single_k(adj_ref, x_ref, o_ref):
    # Whole contraction in one K step: no accumulator round trip, single store.
    o_ref[...] = jnp.dot(
        adj_ref[...], x_ref[...], preferred_element_type=jnp.float32
    ).astype(o_ref.dtype)


def _graph_tiled_kernel_multi_k(adj_ref, x_ref, o_ref, acc_ref):
    k = pl.program_id(2)
    part = jnp.dot(adj_ref[...], x_ref[...], preferred_element_type=jnp.float32)

    @pl.when(k == 0)
    def _first():
        acc_ref[...] = part  # write, not zero-init + add

    @pl.when(k > 0)
    def _rest():
        acc_ref[...] += part

    @pl.when(k == pl.num_programs(2) - 1)
    def _store():
        o_ref[...] = acc_ref[...].astype(o_ref.dtype)


# ---------------------------------------------------------------------------
# Wrappers
# ---------------------------------------------------------------------------
def _graph_forward_fused(adj, x):
    B, N, F = x.shape
    cost = pl.CostEstimate(
        flops=2 * B * N * N * F,
        transcendentals=0,
        bytes_accessed=(adj.size + 2 * x.size) * 4,
    )
    out = pl.pallas_call(
        _graph_fused_kernel,
        out_shape=jax.ShapeDtypeStruct((B, N, F), jnp.float32),
        cost_estimate=cost,
    )(adj.astype(jnp.float32), x.astype(jnp.float32))
    return out.astype(x.dtype)


def _graph_forward_tiled(adj, x, tile_m, tile_n, tile_k, single_k_max):
    B, N, F = x.shape
    L = B * F

    adj_f = adj.astype(jnp.float32)
    # Pack batch into lanes: [B,N,F] -> [N, B*F]; one lane-dense matmul.
    x2 = jnp.transpose(x.astype(jnp.float32), (1, 0, 2)).reshape(N, L)

    # M (output rows): sublane dim, align to 8; divisor-aware tile (no extra pad).
    m_pad = _round_up(N, 8)
    tm = _largest_aligned_divisor(m_pad, 8, max(tile_m, 8))
    # K (contraction): single step when it fits -> block equals the full dim, so no
    # padding to 128 at all.  Otherwise pad to 128 and use a divisor-aware tile.
    if N <= single_k_max:
        k_pad, tk = N, N
    else:
        k_pad = _round_up(N, 128)
        tk = _largest_aligned_divisor(k_pad, 128, max(tile_k, 128))
    # Lanes: multiples of 128 for unmasked vst; divisor-aware tile.
    l_pad = _round_up(L, 128)
    tn = _largest_aligned_divisor(l_pad, 128, max(tile_n, 128))

    adj_p = adj_f
    if m_pad != N or k_pad != N:
        adj_p = jnp.pad(adj_f, ((0, m_pad - N), (0, k_pad - N)))
    x2_p = x2
    if k_pad != N or l_pad != L:
        x2_p = jnp.pad(x2, ((0, k_pad - N), (0, l_pad - L)))

    grid = (m_pad // tm, l_pad // tn, k_pad // tk)  # reduction axis last
    multi_k = grid[2] > 1

    cost = pl.CostEstimate(
        flops=2 * N * N * L,  # true, un-padded
        transcendentals=0,
        bytes_accessed=(adj_f.size + x2.size + N * L) * 4,
    )

    kernel = _graph_tiled_kernel_multi_k if multi_k else _graph_tiled_kernel_single_k
    scratch = [pltpu.VMEM((tm, tn), jnp.float32)] if multi_k else []

    out_p = pl.pallas_call(
        kernel,
        out_shape=jax.ShapeDtypeStruct((m_pad, l_pad), jnp.float32),
        grid=grid,
        in_specs=[
            pl.BlockSpec((tm, tk), lambda i, j, k: (i, k)),  # adj tile
            pl.BlockSpec((tk, tn), lambda i, j, k: (k, j)),  # packed-x tile
        ],
        out_specs=pl.BlockSpec((tm, tn), lambda i, j, k: (i, j)),
        scratch_shapes=scratch,
        compiler_params=pltpu.CompilerParams(
            dimension_semantics=("parallel", "parallel", "arbitrary"),
            vmem_limit_bytes=32 * 1024 * 1024,
        ),
        cost_estimate=cost,
    )(adj_p, x2_p)

    out = out_p[:N, :L].reshape(N, B, F).transpose(1, 0, 2)
    return out.astype(x.dtype)


def graph_forward(adj, x, *, impl=None, tile_m=512, tile_n=512, tile_k=1024,
                  single_k_max=2048):
    """Graph op of ModelOp: adj.matmul(x). adj [N,N], x [B,N,F] -> [B,N,F]."""
    B, N, F = x.shape
    assert adj.shape == (N, N)
    if impl is None:
        if x.size <= 64 * 1024 and adj.size <= 64 * 1024:
            impl = "xla"      # launch-overhead bound: let XLA fuse one dot
        elif (adj.size + 2 * x.size) * 4 <= 16 * 1024 * 1024:
            impl = "fused"    # everything fits in VMEM in one shot
        else:
            impl = "tiled"
    if impl == "xla":
        return jnp.einsum("nm,bmf->bnf", adj, x)
    if impl == "fused":
        return _graph_forward_fused(adj, x)
    assert impl == "tiled"
    return _graph_forward_tiled(adj, x, tile_m, tile_n, tile_k, single_k_max)


if __name__ == "__main__":
    key = jax.random.PRNGKey(0)
    k_adj, k_x, k_adj2, k_x2 = jax.random.split(key, 4)

    # --- ModelOp's Graph op at the module's small shapes: batch=2, nodes=8, hid=32.
    B, N, F = 2, 8, 32
    adj = jax.random.uniform(k_adj, (N, N), dtype=jnp.float32)
    x = jax.random.normal(k_x, (B, N, F), dtype=jnp.float32)
    ref = jnp.einsum("nm,bmf->bnf", adj, x, precision=jax.lax.Precision.HIGHEST)

    # Single-shot fused Pallas kernel (the path used for module-sized inputs).
    out_fused = jax.block_until_ready(graph_forward(adj, x, impl="fused"))
    assert out_fused.shape == (B, N, F)
    assert jnp.allclose(out_fused, ref, rtol=3e-2, atol=3e-2), "fused path mismatch"

    # Auto path at tiny shapes falls back to a single XLA dot (by design).
    out_auto = jax.block_until_ready(graph_forward(adj, x))
    assert jnp.allclose(out_auto, ref, rtol=3e-2, atol=3e-2), "auto path mismatch"

    # --- Moderate size exercising the tiled path (single-K and forced multi-K).
    B2, N2, F2 = 2, 380, 96   # deliberately off the 8/128 grids to test padding
    adj2 = jax.random.uniform(k_adj2, (N2, N2), dtype=jnp.float32)
    x2 = jax.random.normal(k_x2, (B2, N2, F2), dtype=jnp.float32)
    ref2 = jnp.einsum("nm,bmf->bnf", adj2, x2, precision=jax.lax.Precision.HIGHEST)

    out_single_k = jax.block_until_ready(graph_forward(adj2, x2, impl="tiled"))
    assert out_single_k.shape == (B2, N2, F2)
    assert jnp.allclose(out_single_k, ref2, rtol=2e-2, atol=2e-1), "tiled(1K) mismatch"

    out_multi_k = jax.block_until_ready(
        graph_forward(adj2, x2, impl="tiled", tile_k=128, single_k_max=128)
    )
    assert jnp.allclose(out_multi_k, ref2, rtol=2e-2, atol=2e-1), "tiled(mK) mismatch"

    print("KERNEL_OK")
</pallas_src>

<mosaic_0001>
module attributes {stable_mosaic.version = 11 : i64} {
  func.func @_graph_fused_kernel(%arg0: memref<8x8xf32, #tpu.memory_space<vmem>>, %arg1: memref<2x8x32xf32, #tpu.memory_space<vmem>>, %arg2: memref<2x8x32xf32, #tpu.memory_space<vmem>>) attributes {dimension_semantics = [], scalar_prefetch = 0 : i64, scratch_operands = 0 : i64, tpu.core_type = #tpu.core_type<tc>} {
    %c0 = arith.constant 0 : index
    %c0_0 = arith.constant 0 : index
    %0 = vector.load %arg0[%c0, %c0_0] : memref<8x8xf32, #tpu.memory_space<vmem>>, vector<8x8xf32>
    %c0_1 = arith.constant 0 : index
    %c0_2 = arith.constant 0 : index
    %c0_3 = arith.constant 0 : index
    %1 = vector.load %arg1[%c0_1, %c0_2, %c0_3] : memref<2x8x32xf32, #tpu.memory_space<vmem>>, vector<1x8x32xf32>
    %2 = vector.shape_cast %1 : vector<1x8x32xf32> to vector<8x32xf32>
    %cst = arith.constant dense<0.000000e+00> : vector<8x32xf32>
    %3 = tpu.matmul %0, %2, %cst {dimension_numbers = #tpu.dot_dimension_numbers<[1], [0], [0], [1], [0, 0, 1, 1], [], []>} : vector<8x8xf32>, vector<8x32xf32>, vector<8x32xf32> -> vector<8x32xf32>
    %c0_4 = arith.constant 0 : index
    %c0_5 = arith.constant 0 : index
    %c0_6 = arith.constant 0 : index
    %4 = vector.load %arg2[%c0_4, %c0_5, %c0_6] : memref<2x8x32xf32, #tpu.memory_space<vmem>>, vector<1x8x32xf32>
    %5 = vector.shape_cast %4 : vector<1x8x32xf32> to vector<8x32xf32>
    %6 = vector.shape_cast %3 : vector<8x32xf32> to vector<1x8x32xf32>
    tpu.vector_store %arg2[%c0_4, %c0_5, %c0_6], %6 {strides = array<i32>} : memref<2x8x32xf32, #tpu.memory_space<vmem>>, vector<1x8x32xf32>,
    %c1 = arith.constant 1 : index
    %c0_7 = arith.constant 0 : index
    %c0_8 = arith.constant 0 : index
    %7 = vector.load %arg1[%c1, %c0_7, %c0_8] : memref<2x8x32xf32, #tpu.memory_space<vmem>>, vector<1x8x32xf32>
    %8 = vector.shape_cast %7 : vector<1x8x32xf32> to vector<8x32xf32>
    %cst_9 = arith.constant dense<0.000000e+00> : vector<8x32xf32>
    %9 = tpu.matmul %0, %8, %cst_9 {dimension_numbers = #tpu.dot_dimension_numbers<[1], [0], [0], [1], [0, 0, 1, 1], [], []>} : vector<8x8xf32>, vector<8x32xf32>, vector<8x32xf32> -> vector<8x32xf32>
    %c1_10 = arith.constant 1 : index
    %c0_11 = arith.constant 0 : index
    %c0_12 = arith.constant 0 : index
    %10 = vector.load %arg2[%c1_10, %c0_11, %c0_12] : memref<2x8x32xf32, #tpu.memory_space<vmem>>, vector<1x8x32xf32>
    %11 = vector.shape_cast %10 : vector<1x8x32xf32> to vector<8x32xf32>
    %12 = vector.shape_cast %9 : vector<8x32xf32> to vector<1x8x32xf32>
    tpu.vector_store %arg2[%c1_10, %c0_11, %c0_12], %12 {strides = array<i32>} : memref<2x8x32xf32, #tpu.memory_space<vmem>>, vector<1x8x32xf32>,
    return
  }
}

</mosaic_0001>

<llo_original>
// kernel: tpu_custom_call.1
$region0: #{tpu_custom_call.1}
  #allocation0 [shape = 'u32[]', space=smem, size = 0x4, offset = 0x4, fixed_abs, tag = 'smem constant byte address 0x4 - core index']
  #allocation1 [shape = 'u32[144,128]{1,0:T(1,128)}', space=vmem, size = 0x12000, scoped, tag = 'internal scratch']
  %s0 = inlined_call_operand.hbm [shape: f32[8,8], index: 0, kind: input, shape index: {}]
  %s1 = inlined_call_operand.hbm [shape: f32[2,8,32], index: 1, kind: input, shape index: {}]
  %s2 = inlined_call_operand.hbm [shape: f32[2,8,32], index: 2, kind: output, shape index: {}]
  %s3 = sld [smem:[#allocation0]]
  $region26: #{tpu_custom_call.1} parent=0
    _
  %s5 = ssub.s32 1, %s3
  %s6 = scalar_select 0, %s5, %s3
  $region1: #{tpu_custom_call.1} parent=0
    #allocation2 [shape = 'u8[4096]{0}', space=vmem, size = 0x1000, scoped, tag = 'input window, operand 0, single buffered']
    #allocation3 [shape = 's32[1]{0}', space=sflag, size = 0x4, scoped, tag = 'scoped memory for tpu_custom_call.1']
    #allocation4 [shape = 's32[1]{0}', space=sflag, size = 0x4, scoped, tag = 'scoped memory for tpu_custom_call.1']
    #allocation5 [shape = 'u8[8192]{0}', space=vmem, size = 0x2000, scoped, tag = 'input window, operand 1, single buffered']
    #allocation6 [shape = 's32[1]{0}', space=sflag, size = 0x4, scoped, tag = 'scoped memory for tpu_custom_call.1']
    #allocation7 [shape = 'u8[8192]{0}', space=vmem, size = 0x2000, scoped, tag = 'output window, operand 0, single buffered']
    %7 = vsyncpa [#allocation3], 0
    %8 = vsyncpa [#allocation6], 0
    %9 = vsyncpa [#allocation4], 0
    // Predicated region
    $region2: #{tpu_custom_call.1} parent=1 // pred_check
      _
    $region3: #{tpu_custom_call.1} parent=1 // pred_check_branch
      %11 = sbr.rel (0) target = $region5
    $region4: #{tpu_custom_call.1} parent=1 // pred_region
      %s13 = ssub.s32 128, 128
      %14 = vsyncadd [#allocation3], %s13
      %s16 = sshll.u32 [#allocation2], 4
      %s17 = int_to_ptr.vmem [resolvable:$true] %s16
      %19 = dma.hbm_to_vmem [thread:$0]  %s0, 128, %s17, [#allocation3]
    $region5: #{tpu_custom_call.1} parent=1 // pred_fallthru
      _
    // Predicated region
    $region6: #{tpu_custom_call.1} parent=1 // pred_check
      _
    $region7: #{tpu_custom_call.1} parent=1 // pred_check_branch
      %21 = sbr.rel (0) target = $region9
    $region8: #{tpu_custom_call.1} parent=1 // pred_region
      %s23 = ssub.s32 256, 256
      %24 = vsyncadd [#allocation6], %s23
      %s25 = sshll.u32 [#allocation5], 4
      %s26 = int_to_ptr.vmem [resolvable:$true] %s25
      %31 = dma.hbm_to_vmem [thread:$0]  %s1, 256, %s26, [#allocation6], 128, 128, 8
    $region9: #{tpu_custom_call.1} parent=1 // pred_fallthru
      _
    // Predicated region
    $region10: #{tpu_custom_call.1} parent=1 // pred_check
      _
    $region11: #{tpu_custom_call.1} parent=1 // pred_check_branch
      %33 = sbr.rel (0) target = $region13
    $region12: #{tpu_custom_call.1} parent=1 // pred_region
      %34 = dma.done [#allocation3], 128
    $region13: #{tpu_custom_call.1} parent=1 // pred_fallthru
      _
    // Predicated region
    $region14: #{tpu_custom_call.1} parent=1 // pred_check
      _
    $region15: #{tpu_custom_call.1} parent=1 // pred_check_branch
      %36 = sbr.rel (0) target = $region17
    $region16: #{tpu_custom_call.1} parent=1 // pred_region
      %37 = dma.done [#allocation6], 256
    $region17: #{tpu_custom_call.1} parent=1 // pred_fallthru
      _
    %v38 = vld [vmem:[#allocation2] sm:$0xff]
    %v39 = vld [vmem:[#allocation5] sm:$0xff]
    %vm40 = vcmask 64512
    %v42 = vsel %vm40, %v38, 0
    %44 = vmatprep.subr.mxu0 0.0
    %45 = vmatpush1.msra.mxu0 %v39
    %46 = vmatprep.subr.mxu0 0.0
    %47 = vmatpush1.msra.mxu0 0.0
    %48 = vmatprep.subr.mxu0 0.0
    %49 = vmatpush1.msra.mxu0 0.0
    %50 = vmatprep.subr.mxu0 0.0
    %51 = vmatpush1.msra.mxu0 0.0
    %52 = vmatprep.subr.mxu0 0.0
    %53 = vmatpush1.msra.mxu0 0.0
    %54 = vmatprep.subr.mxu0 0.0
    %55 = vmatpush1.msra.mxu0 0.0
    %56 = vmatprep.subr.mxu0 0.0
    %57 = vmatpush1.msra.mxu0 0.0
    %58 = vmatprep.subr.mxu0 0.0
    %59 = vmatpush1.msra.mxu0 0.0
    %60 = vmatprep.subr.mxu0 0.0
    %61 = vmatpush1.msra.mxu0 0.0
    %62 = vmatprep.subr.mxu0 0.0
    %63 = vmatpush1.msra.mxu0 0.0
    %64 = vmatprep.subr.mxu0 0.0
    %65 = vmatpush1.msra.mxu0 0.0
    %66 = vmatprep.subr.mxu0 0.0
    %67 = vmatpush1.msra.mxu0 0.0
    %68 = vmatprep.subr.mxu0 0.0
    %69 = vmatpush1.msra.mxu0 0.0
    %70 = vmatprep.subr.mxu0 0.0
    %71 = vmatpush1.msra.mxu0 0.0
    %72 = vmatprep.subr.mxu0 0.0
    %73 = vmatpush1.msra.mxu0 0.0
    %74 = vmatprep.subr.mxu0 0.0
    %75 = vmatpush1.msra.mxu0 0.0
    %76 = vmatprep.subr.mxu0 0.0
    %77 = vmatpush1.msra.mxu0 0.0
    %78 = vmatprep.subr.mxu0 0.0
    %79 = vmatpush1.msra.mxu0 0.0
    %80 = vmatprep.subr.mxu0 0.0
    %81 = vmatpush1.msra.mxu0 0.0
    %82 = vmatprep.subr.mxu0 0.0
    %83 = vmatpush1.msra.mxu0 0.0
    %84 = vmatprep.subr.mxu0 0.0
    %85 = vmatpush1.msra.mxu0 0.0
    %86 = vmatprep.subr.mxu0 0.0
    %87 = vmatpush1.msra.mxu0 0.0
    %88 = vmatprep.subr.mxu0 0.0
    %89 = vmatpush1.msra.mxu0 0.0
    %90 = vmatprep.subr.mxu0 0.0
    %91 = vmatpush1.msra.mxu0 0.0
    %92 = vmatprep.subr.mxu0 0.0
    %93 = vmatpush1.msra.mxu0 0.0
    %94 = vmatprep.subr.mxu0 0.0
    %95 = vmatpush1.msra.mxu0 0.0
    %96 = vmatprep.subr.mxu0 0.0
    %97 = vmatpush1.msra.mxu0 0.0
    %98 = vmatprep.subr.mxu0 0.0
    %99 = vmatpush1.msra.mxu0 0.0
    %100 = vmatprep.subr.mxu0 0.0
    %101 = vmatpush1.msra.mxu0 0.0
    %102 = vmatprep.subr.mxu0 0.0
    %103 = vmatpush1.msra.mxu0 0.0
    %104 = vmatprep.subr.mxu0 0.0
    %105 = vmatpush1.msra.mxu0 0.0
    %106 = vmatprep.subr.mxu0 0.0
    %107 = vmatpush1.msra.mxu0 0.0
    %108 = vmatprep.mubr.f32.mxu0 0.0
    %109 = vmatmul.mubr.f32.gmra.mrb[0].mxu0 %v42
    %v110 = vpop.f32.mrb[0].mxu0
    %v111 = vadd.f32 0.0, %v110
    %v112 = vpop.f32.mrb[0].mxu0
    %113 = vdwg.mxu0
    %vm114 = vcmask 261120
    %115 = vst.msk [vmem:[#allocation7] sm:$0xff] %vm114, %v111
    %s116 = scalar_lea.vmem [#allocation5], 8
    %v117 = vld [vmem:[%s116] sm:$0xff]
    %118 = vmatprep.subr.mxu0 0.0
    %119 = vmatpush1.msra.mxu0 %v117
    %120 = vmatprep.subr.mxu0 0.0
    %121 = vmatpush1.msra.mxu0 0.0
    %122 = vmatprep.subr.mxu0 0.0
    %123 = vmatpush1.msra.mxu0 0.0
    %124 = vmatprep.subr.mxu0 0.0
    %125 = vmatpush1.msra.mxu0 0.0
    %126 = vmatprep.subr.mxu0 0.0
    %127 = vmatpush1.msra.mxu0 0.0
    %128 = vmatprep.subr.mxu0 0.0
    %129 = vmatpush1.msra.mxu0 0.0
    %130 = vmatprep.subr.mxu0 0.0
    %131 = vmatpush1.msra.mxu0 0.0
    %132 = vmatprep.subr.mxu0 0.0
    %133 = vmatpush1.msra.mxu0 0.0
    %134 = vmatprep.subr.mxu0 0.0
    %135 = vmatpush1.msra.mxu0 0.0
    %136 = vmatprep.subr.mxu0 0.0
    %137 = vmatpush1.msra.mxu0 0.0
    %138 = vmatprep.subr.mxu0 0.0
    %139 = vmatpush1.msra.mxu0 0.0
    %140 = vmatprep.subr.mxu0 0.0
    %141 = vmatpush1.msra.mxu0 0.0
    %142 = vmatprep.subr.mxu0 0.0
    %143 = vmatpush1.msra.mxu0 0.0
    %144 = vmatprep.subr.mxu0 0.0
    %145 = vmatpush1.msra.mxu0 0.0
    %146 = vmatprep.subr.mxu0 0.0
    %147 = vmatpush1.msra.mxu0 0.0
    %148 = vmatprep.subr.mxu0 0.0
    %149 = vmatpush1.msra.mxu0 0.0
    %150 = vmatprep.subr.mxu0 0.0
    %151 = vmatpush1.msra.mxu0 0.0
    %152 = vmatprep.subr.mxu0 0.0
    %153 = vmatpush1.msra.mxu0 0.0
    %154 = vmatprep.subr.mxu0 0.0
    %155 = vmatpush1.msra.mxu0 0.0
    %156 = vmatprep.subr.mxu0 0.0
    %157 = vmatpush1.msra.mxu0 0.0
    %158 = vmatprep.subr.mxu0 0.0
    %159 = vmatpush1.msra.mxu0 0.0
    %160 = vmatprep.subr.mxu0 0.0
    %161 = vmatpush1.msra.mxu0 0.0
    %162 = vmatprep.subr.mxu0 0.0
    %163 = vmatpush1.msra.mxu0 0.0
    %164 = vmatprep.subr.mxu0 0.0
    %165 = vmatpush1.msra.mxu0 0.0
    %166 = vmatprep.subr.mxu0 0.0
    %167 = vmatpush1.msra.mxu0 0.0
    %168 = vmatprep.subr.mxu0 0.0
    %169 = vmatpush1.msra.mxu0 0.0
    %170 = vmatprep.subr.mxu0 0.0
    %171 = vmatpush1.msra.mxu0 0.0
    %172 = vmatprep.subr.mxu0 0.0
    %173 = vmatpush1.msra.mxu0 0.0
    %174 = vmatprep.subr.mxu0 0.0
    %175 = vmatpush1.msra.mxu0 0.0
    %176 = vmatprep.subr.mxu0 0.0
    %177 = vmatpush1.msra.mxu0 0.0
    %178 = vmatprep.subr.mxu0 0.0
    %179 = vmatpush1.msra.mxu0 0.0
    %180 = vmatprep.subr.mxu0 0.0
    %181 = vmatpush1.msra.mxu0 0.0
    %182 = vmatprep.mubr.f32.mxu0 0.0
    %183 = vmatmul.mubr.f32.gmra.mrb[0].mxu0 %v42
    %v184 = vpop.f32.mrb[0].mxu0
    %v185 = vadd.f32 0.0, %v184
    %v186 = vpop.f32.mrb[0].mxu0
    %187 = vdwg.mxu0
    %s188 = scalar_lea.vmem [#allocation7], 8
    %189 = vst.msk [vmem:[%s188] sm:$0xff] %vm114, %v185
    // Predicated region
    $region18: #{tpu_custom_call.1} parent=1 // pred_check
      _
    $region19: #{tpu_custom_call.1} parent=1 // pred_check_branch
      %191 = sbr.rel (0) target = $region21
    $region20: #{tpu_custom_call.1} parent=1 // pred_region
      %s193 = ssub.s32 256, 256
      %194 = vsyncadd [#allocation4], %s193
      %s195 = sshll.u32 [#allocation7], 4
      %s196 = int_to_ptr.vmem [resolvable:$true] %s195
      %201 = dma.vmem_to_hbm [thread:$0]  %s196, 256, %s2, [#allocation4], 128, 128, 8
    $region21: #{tpu_custom_call.1} parent=1 // pred_fallthru
      _
    // Predicated region
    $region22: #{tpu_custom_call.1} parent=1 // pred_check
      _
    $region23: #{tpu_custom_call.1} parent=1 // pred_check_branch
      %203 = sbr.rel (0) target = $region25
    $region24: #{tpu_custom_call.1} parent=1 // pred_region
      %204 = dma.done [#allocation4], 256
    $region25: #{tpu_custom_call.1} parent=1 // pred_fallthru
      _
    %205 = vsyncpa [#allocation3], 1
    %206 = vsyncpa [#allocation6], 1
    %207 = vsyncpa [#allocation4], 1

</llo_original>
